<compile_context>
chip_gen: v7x
topology: tpu7x:2x2x1
jax: 0.10.0
libtpu: 0.0.40
codegen_flags: <defaults>
</compile_context>

<pallas_src>
import functools

import jax
import jax.numpy as jnp
from jax.experimental import pallas as pl
from jax.experimental.pallas import tpu as pltpu

C0 = 0.28209479177387814
C1 = 0.4886025119029199
C2 = [1.0925484305920792, -1.0925484305920792, 0.31539156525252005,
      -1.0925484305920792, 0.5462742152960396]
C3 = [-0.5900435899266435, 2.890611442640554, -0.4570457994644658,
      0.3731763325901154, -0.4570457994644658, 1.445305721320277,
      -0.5900435899266435]
C4 = [2.5033429417967046, -1.7701307697799304, 0.9461746957575601,
      -0.6690465435572892, 0.10578554691520431, -0.6690465435572892,
      0.47308734787878004, -1.7701307697799304, 0.6258357354491761]

_LANES = 128      # lane width of a vreg
_ROW_ALIGN = 16   # sublane alignment (covers f32 (8,128) and bf16 (16,128) tiles)


def _sh_basis_terms(x, y, z, deg):
    """Yield (k, SH_k) for basis indices k >= 1 (k = 0 is the constant C0).

    Implemented as a generator so terms are produced lazily (k-outer order) and
    shared sub-expressions are computed exactly once per tile.
    """
    if deg <= 0:
        return
    yield 1, (-C1) * y
    yield 2, C1 * z
    yield 3, (-C1) * x
    if deg <= 1:
        return
    xx, yy, zz = x * x, y * y, z * z
    xy, yz, xz = x * y, y * z, x * z
    yield 4, C2[0] * xy
    yield 5, C2[1] * yz
    yield 6, C2[2] * (2.0 * zz - xx - yy)
    yield 7, C2[3] * xz
    yield 8, C2[4] * (xx - yy)
    if deg <= 2:
        return
    yield 9, C3[0] * y * (3 * xx - yy)
    yield 10, C3[1] * xy * z
    yield 11, C3[2] * y * (4 * zz - xx - yy)
    yield 12, C3[3] * z * (2 * zz - 3 * xx - 3 * yy)
    yield 13, C3[4] * x * (4 * zz - xx - yy)
    yield 14, C3[5] * z * (xx - yy)
    yield 15, C3[6] * x * (xx - 3 * yy)
    if deg <= 3:
        return
    yield 16, C4[0] * xy * (xx - yy)
    yield 17, C4[1] * yz * (3 * xx - yy)
    yield 18, C4[2] * xy * (7 * zz - 1)
    yield 19, C4[3] * yz * (7 * zz - 3)
    yield 20, C4[4] * (zz * (35 * zz - 30) + 3)
    yield 21, C4[5] * xz * (7 * zz - 3)
    yield 22, C4[6] * (xx - yy) * (7 * zz - 1)
    yield 23, C4[7] * xz * (xx - 3 * yy)
    yield 24, C4[8] * (xx * (xx - 3 * yy) - yy * (3 * xx - yy))


def _sh_render_kernel(dirs_ref, feat_ref, out_ref, *, deg):
    """dirs_ref:(3,R,128)  feat_ref:(3*n_sh,R,128)  out_ref:(3,R,128)."""
    n_sh = (deg + 1) ** 2
    f32 = jnp.float32

    def feat(c, k):
        # Contiguous, fully lane/sublane-dense (R,128) slab.
        return feat_ref[c * n_sh + k].astype(f32)

    # DC term and +0.5 bias folded into the accumulator init (f32 accumulation
    # regardless of input dtype — bf16 features are accepted without upcasting
    # in HBM).
    acc = [C0 * feat(c, 0) + 0.5 for c in range(3)]

    if deg > 0:
        x = dirs_ref[0].astype(f32)
        y = dirs_ref[1].astype(f32)
        z = dirs_ref[2].astype(f32)
        # k-outer / channel-inner: one SH term live at a time, 3 accumulators.
        for k, sh_k in _sh_basis_terms(x, y, z, deg):
            for c in range(3):
                acc[c] = acc[c] + sh_k * feat(c, k)

    # Per-channel full-width, unmasked stores (no lane-sparse concat/epilogue).
    for c in range(3):
        out_ref[c] = jnp.maximum(acc[c], 0.0).astype(out_ref.dtype)


def sh_render(features, viewdirs, *, deg=2, block_rows=512):
    """Pallas implementation of SHRender.forward.

    features : (B, H, W, 3*(deg+1)^2)  SH coefficients, [R coeffs|G coeffs|B coeffs]
    viewdirs : (B, H, W, 3)            unit view directions
    returns  : (B, H, W, 3)            relu(sum_k sh_k * feat[c,k] + 0.5)
    """
    assert 0 <= deg <= 4
    B, H, W, _ = viewdirs.shape
    n_sh = (deg + 1) ** 2
    channels = 3 * n_sh
    assert features.shape == (B, H, W, channels)
    N = B * H * W

    # ---- block sizing ------------------------------------------------------
    # Keep the double-buffered (dirs + feat + out) blocks well inside the
    # requested 32 MiB scoped VMEM (safe on v5e/v6e/v7x), leaving headroom for
    # Mosaic's elementwise temporaries.
    io_budget = 16 * 1024 * 1024
    bytes_per_row = (3 + channels + 3) * 4 * _LANES          # f32 worst case
    max_rows = max(_ROW_ALIGN,
                   (io_budget // (2 * bytes_per_row)) // _ROW_ALIGN * _ROW_ALIGN)
    block_rows = max(_ROW_ALIGN, min(block_rows, max_rows))

    rows_total = pl.cdiv(N, _LANES)
    block_rows = min(block_rows,
                     max(_ROW_ALIGN, pl.cdiv(rows_total, _ROW_ALIGN) * _ROW_ALIGN))
    n_blocks = pl.cdiv(rows_total, block_rows)
    rows_padded = n_blocks * block_rows
    n_pad = rows_padded * _LANES

    # ---- channel-major, pixel-dense layout: (C, rows, 128) ------------------
    # TODO(synk): this wrapper transpose is an extra HBM pass over features;
    # have the upstream producer emit channel-major to avoid it entirely.
    dirs_flat = viewdirs.reshape(N, 3)
    feat_flat = features.reshape(N, channels)
    if n_pad != N:
        dirs_flat = jnp.pad(dirs_flat, ((0, n_pad - N), (0, 0)))
        feat_flat = jnp.pad(feat_flat, ((0, n_pad - N), (0, 0)))
    dirs_t = dirs_flat.T.reshape(3, rows_padded, _LANES)
    feat_t = feat_flat.T.reshape(channels, rows_padded, _LANES)

    out_t = pl.pallas_call(
        functools.partial(_sh_render_kernel, deg=deg),
        out_shape=jax.ShapeDtypeStruct((3, rows_padded, _LANES), features.dtype),
        grid=(n_blocks,),
        in_specs=[
            pl.BlockSpec((3, block_rows, _LANES), lambda i: (0, i, 0)),
            pl.BlockSpec((channels, block_rows, _LANES), lambda i: (0, i, 0)),
        ],
        out_specs=pl.BlockSpec((3, block_rows, _LANES), lambda i: (0, i, 0)),
        compiler_params=pltpu.CompilerParams(
            dimension_semantics=("parallel",),        # shard rows across TCs (v7x)
            vmem_limit_bytes=32 * 1024 * 1024,
        ),
    )(dirs_t, feat_t)

    rgb = out_t.reshape(3, n_pad).T[:N].reshape(B, H, W, 3)
    return rgb


def _sh_render_reference(features, viewdirs, deg=2):
    """Pure-JAX reference mirroring the PyTorch forward."""
    x, y, z = viewdirs[..., 0], viewdirs[..., 1], viewdirs[..., 2]
    n_sh = (deg + 1) ** 2
    sh = [jnp.full_like(x, C0)] + [None] * (n_sh - 1)
    for k, term in _sh_basis_terms(x, y, z, deg):
        sh[k] = term
    sh = jnp.stack(sh, axis=-1)                                     # (B,H,W,n_sh)
    rgb_sh = features.reshape(*features.shape[:-1], 3, n_sh)        # (B,H,W,3,n_sh)
    return jnp.maximum(jnp.sum(sh[..., None, :] * rgb_sh, axis=-1) + 0.5, 0.0)


if __name__ == "__main__":
    key = jax.random.PRNGKey(0)
    k1, k2, k3 = jax.random.split(key, 3)

    deg = 2
    n_sh = (deg + 1) ** 2                 # 9
    channels = 3 * n_sh                   # 27
    B, H, W = 2, 8, 8                     # N = 128 pixels

    viewdirs = jax.random.normal(k1, (B, H, W, 3), dtype=jnp.float32)
    viewdirs = viewdirs / jnp.linalg.norm(viewdirs, axis=-1, keepdims=True)
    features = jax.random.normal(k2, (B, H, W, channels), dtype=jnp.float32)

    # TODO(synk): SHRender.__init__ defines nn.Linear(channels, 3*n_sh, bias=False)
    # but never uses it in forward; kept here only for parity with the module.
    _linear_w = 0.01 * jax.random.normal(k3, (3 * n_sh, channels), dtype=jnp.float32)

    rgb = sh_render(features, viewdirs, deg=deg)
    rgb = jax.block_until_ready(rgb)

    ref = _sh_render_reference(features, viewdirs, deg=deg)
    assert rgb.shape == (B, H, W, 3)
    assert jnp.allclose(rgb, ref, atol=1e-5, rtol=1e-5)

    print("KERNEL_OK")
</pallas_src>

<mosaic_0001>
module attributes {stable_mosaic.version = 11 : i64} {
  func.func @_sh_render_kernel(%arg0: i32, %arg1: memref<3x16x128xf32, #tpu.memory_space<vmem>>, %arg2: memref<27x16x128xf32, #tpu.memory_space<vmem>>, %arg3: memref<3x16x128xf32, #tpu.memory_space<vmem>>) attributes {dimension_semantics = [#tpu.dimension_semantics<parallel>], iteration_bounds = array<i64: 1>, scalar_prefetch = 0 : i64, scratch_operands = 0 : i64, tpu.core_type = #tpu.core_type<tc>, window_params = [{transform_indices = @transform_0, window_bounds = array<i64: 3, 16, 128>}, {transform_indices = @transform_1, window_bounds = array<i64: 27, 16, 128>}, {transform_indices = @transform_2, window_bounds = array<i64: 3, 16, 128>}]} {
    %c0 = arith.constant 0 : index
    %c0_0 = arith.constant 0 : index
    %c0_1 = arith.constant 0 : index
    %0 = vector.load %arg2[%c0, %c0_0, %c0_1] : memref<27x16x128xf32, #tpu.memory_space<vmem>>, vector<1x16x128xf32>
    %1 = vector.shape_cast %0 : vector<1x16x128xf32> to vector<16x128xf32>
    %cst = arith.constant 0.282094806 : f32
    %2 = vector.broadcast %cst : f32 to vector<16x128xf32>
    %3 = arith.mulf %2, %1 : vector<16x128xf32>
    %cst_2 = arith.constant 5.000000e-01 : f32
    %4 = vector.broadcast %cst_2 : f32 to vector<16x128xf32>
    %5 = arith.addf %3, %4 : vector<16x128xf32>
    %c9 = arith.constant 9 : index
    %c0_3 = arith.constant 0 : index
    %c0_4 = arith.constant 0 : index
    %6 = vector.load %arg2[%c9, %c0_3, %c0_4] : memref<27x16x128xf32, #tpu.memory_space<vmem>>, vector<1x16x128xf32>
    %7 = vector.shape_cast %6 : vector<1x16x128xf32> to vector<16x128xf32>
    %cst_5 = arith.constant 0.282094806 : f32
    %8 = vector.broadcast %cst_5 : f32 to vector<16x128xf32>
    %9 = arith.mulf %8, %7 : vector<16x128xf32>
    %cst_6 = arith.constant 5.000000e-01 : f32
    %10 = vector.broadcast %cst_6 : f32 to vector<16x128xf32>
    %11 = arith.addf %9, %10 : vector<16x128xf32>
    %c18 = arith.constant 18 : index
    %c0_7 = arith.constant 0 : index
    %c0_8 = arith.constant 0 : index
    %12 = vector.load %arg2[%c18, %c0_7, %c0_8] : memref<27x16x128xf32, #tpu.memory_space<vmem>>, vector<1x16x128xf32>
    %13 = vector.shape_cast %12 : vector<1x16x128xf32> to vector<16x128xf32>
    %cst_9 = arith.constant 0.282094806 : f32
    %14 = vector.broadcast %cst_9 : f32 to vector<16x128xf32>
    %15 = arith.mulf %14, %13 : vector<16x128xf32>
    %cst_10 = arith.constant 5.000000e-01 : f32
    %16 = vector.broadcast %cst_10 : f32 to vector<16x128xf32>
    %17 = arith.addf %15, %16 : vector<16x128xf32>
    %c0_11 = arith.constant 0 : index
    %c0_12 = arith.constant 0 : index
    %c0_13 = arith.constant 0 : index
    %18 = vector.load %arg1[%c0_11, %c0_12, %c0_13] : memref<3x16x128xf32, #tpu.memory_space<vmem>>, vector<1x16x128xf32>
    %19 = vector.shape_cast %18 : vector<1x16x128xf32> to vector<16x128xf32>
    %c1 = arith.constant 1 : index
    %c0_14 = arith.constant 0 : index
    %c0_15 = arith.constant 0 : index
    %20 = vector.load %arg1[%c1, %c0_14, %c0_15] : memref<3x16x128xf32, #tpu.memory_space<vmem>>, vector<1x16x128xf32>
    %21 = vector.shape_cast %20 : vector<1x16x128xf32> to vector<16x128xf32>
    %c2 = arith.constant 2 : index
    %c0_16 = arith.constant 0 : index
    %c0_17 = arith.constant 0 : index
    %22 = vector.load %arg1[%c2, %c0_16, %c0_17] : memref<3x16x128xf32, #tpu.memory_space<vmem>>, vector<1x16x128xf32>
    %23 = vector.shape_cast %22 : vector<1x16x128xf32> to vector<16x128xf32>
    %cst_18 = arith.constant -0.488602519 : f32
    %24 = vector.broadcast %cst_18 : f32 to vector<16x128xf32>
    %25 = arith.mulf %24, %21 : vector<16x128xf32>
    %c1_19 = arith.constant 1 : index
    %c0_20 = arith.constant 0 : index
    %c0_21 = arith.constant 0 : index
    %26 = vector.load %arg2[%c1_19, %c0_20, %c0_21] : memref<27x16x128xf32, #tpu.memory_space<vmem>>, vector<1x16x128xf32>
    %27 = vector.shape_cast %26 : vector<1x16x128xf32> to vector<16x128xf32>
    %28 = arith.mulf %25, %27 : vector<16x128xf32>
    %29 = arith.addf %5, %28 : vector<16x128xf32>
    %c10 = arith.constant 10 : index
    %c0_22 = arith.constant 0 : index
    %c0_23 = arith.constant 0 : index
    %30 = vector.load %arg2[%c10, %c0_22, %c0_23] : memref<27x16x128xf32, #tpu.memory_space<vmem>>, vector<1x16x128xf32>
    %31 = vector.shape_cast %30 : vector<1x16x128xf32> to vector<16x128xf32>
    %32 = arith.mulf %25, %31 : vector<16x128xf32>
    %33 = arith.addf %11, %32 : vector<16x128xf32>
    %c19 = arith.constant 19 : index
    %c0_24 = arith.constant 0 : index
    %c0_25 = arith.constant 0 : index
    %34 = vector.load %arg2[%c19, %c0_24, %c0_25] : memref<27x16x128xf32, #tpu.memory_space<vmem>>, vector<1x16x128xf32>
    %35 = vector.shape_cast %34 : vector<1x16x128xf32> to vector<16x128xf32>
    %36 = arith.mulf %25, %35 : vector<16x128xf32>
    %37 = arith.addf %17, %36 : vector<16x128xf32>
    %cst_26 = arith.constant 0.488602519 : f32
    %38 = vector.broadcast %cst_26 : f32 to vector<16x128xf32>
    %39 = arith.mulf %38, %23 : vector<16x128xf32>
    %c2_27 = arith.constant 2 : index
    %c0_28 = arith.constant 0 : index
    %c0_29 = arith.constant 0 : index
    %40 = vector.load %arg2[%c2_27, %c0_28, %c0_29] : memref<27x16x128xf32, #tpu.memory_space<vmem>>, vector<1x16x128xf32>
    %41 = vector.shape_cast %40 : vector<1x16x128xf32> to vector<16x128xf32>
    %42 = arith.mulf %39, %41 : vector<16x128xf32>
    %43 = arith.addf %29, %42 : vector<16x128xf32>
    %c11 = arith.constant 11 : index
    %c0_30 = arith.constant 0 : index
    %c0_31 = arith.constant 0 : index
    %44 = vector.load %arg2[%c11, %c0_30, %c0_31] : memref<27x16x128xf32, #tpu.memory_space<vmem>>, vector<1x16x128xf32>
    %45 = vector.shape_cast %44 : vector<1x16x128xf32> to vector<16x128xf32>
    %46 = arith.mulf %39, %45 : vector<16x128xf32>
    %47 = arith.addf %33, %46 : vector<16x128xf32>
    %c20 = arith.constant 20 : index
    %c0_32 = arith.constant 0 : index
    %c0_33 = arith.constant 0 : index
    %48 = vector.load %arg2[%c20, %c0_32, %c0_33] : memref<27x16x128xf32, #tpu.memory_space<vmem>>, vector<1x16x128xf32>
    %49 = vector.shape_cast %48 : vector<1x16x128xf32> to vector<16x128xf32>
    %50 = arith.mulf %39, %49 : vector<16x128xf32>
    %51 = arith.addf %37, %50 : vector<16x128xf32>
    %cst_34 = arith.constant -0.488602519 : f32
    %52 = vector.broadcast %cst_34 : f32 to vector<16x128xf32>
    %53 = arith.mulf %52, %19 : vector<16x128xf32>
    %c3 = arith.constant 3 : index
    %c0_35 = arith.constant 0 : index
    %c0_36 = arith.constant 0 : index
    %54 = vector.load %arg2[%c3, %c0_35, %c0_36] : memref<27x16x128xf32, #tpu.memory_space<vmem>>, vector<1x16x128xf32>
    %55 = vector.shape_cast %54 : vector<1x16x128xf32> to vector<16x128xf32>
    %56 = arith.mulf %53, %55 : vector<16x128xf32>
    %57 = arith.addf %43, %56 : vector<16x128xf32>
    %c12 = arith.constant 12 : index
    %c0_37 = arith.constant 0 : index
    %c0_38 = arith.constant 0 : index
    %58 = vector.load %arg2[%c12, %c0_37, %c0_38] : memref<27x16x128xf32, #tpu.memory_space<vmem>>, vector<1x16x128xf32>
    %59 = vector.shape_cast %58 : vector<1x16x128xf32> to vector<16x128xf32>
    %60 = arith.mulf %53, %59 : vector<16x128xf32>
    %61 = arith.addf %47, %60 : vector<16x128xf32>
    %c21 = arith.constant 21 : index
    %c0_39 = arith.constant 0 : index
    %c0_40 = arith.constant 0 : index
    %62 = vector.load %arg2[%c21, %c0_39, %c0_40] : memref<27x16x128xf32, #tpu.memory_space<vmem>>, vector<1x16x128xf32>
    %63 = vector.shape_cast %62 : vector<1x16x128xf32> to vector<16x128xf32>
    %64 = arith.mulf %53, %63 : vector<16x128xf32>
    %65 = arith.addf %51, %64 : vector<16x128xf32>
    %66 = arith.mulf %19, %19 : vector<16x128xf32>
    %67 = arith.mulf %21, %21 : vector<16x128xf32>
    %68 = arith.mulf %23, %23 : vector<16x128xf32>
    %69 = arith.mulf %19, %21 : vector<16x128xf32>
    %70 = arith.mulf %21, %23 : vector<16x128xf32>
    %71 = arith.mulf %19, %23 : vector<16x128xf32>
    %cst_41 = arith.constant 1.09254849 : f32
    %72 = vector.broadcast %cst_41 : f32 to vector<16x128xf32>
    %73 = arith.mulf %72, %69 : vector<16x128xf32>
    %c4 = arith.constant 4 : index
    %c0_42 = arith.constant 0 : index
    %c0_43 = arith.constant 0 : index
    %74 = vector.load %arg2[%c4, %c0_42, %c0_43] : memref<27x16x128xf32, #tpu.memory_space<vmem>>, vector<1x16x128xf32>
    %75 = vector.shape_cast %74 : vector<1x16x128xf32> to vector<16x128xf32>
    %76 = arith.mulf %73, %75 : vector<16x128xf32>
    %77 = arith.addf %57, %76 : vector<16x128xf32>
    %c13 = arith.constant 13 : index
    %c0_44 = arith.constant 0 : index
    %c0_45 = arith.constant 0 : index
    %78 = vector.load %arg2[%c13, %c0_44, %c0_45] : memref<27x16x128xf32, #tpu.memory_space<vmem>>, vector<1x16x128xf32>
    %79 = vector.shape_cast %78 : vector<1x16x128xf32> to vector<16x128xf32>
    %80 = arith.mulf %73, %79 : vector<16x128xf32>
    %81 = arith.addf %61, %80 : vector<16x128xf32>
    %c22 = arith.constant 22 : index
    %c0_46 = arith.constant 0 : index
    %c0_47 = arith.constant 0 : index
    %82 = vector.load %arg2[%c22, %c0_46, %c0_47] : memref<27x16x128xf32, #tpu.memory_space<vmem>>, vector<1x16x128xf32>
    %83 = vector.shape_cast %82 : vector<1x16x128xf32> to vector<16x128xf32>
    %84 = arith.mulf %73, %83 : vector<16x128xf32>
    %85 = arith.addf %65, %84 : vector<16x128xf32>
    %cst_48 = arith.constant -1.09254849 : f32
    %86 = vector.broadcast %cst_48 : f32 to vector<16x128xf32>
    %87 = arith.mulf %86, %70 : vector<16x128xf32>
    %c5 = arith.constant 5 : index
    %c0_49 = arith.constant 0 : index
    %c0_50 = arith.constant 0 : index
    %88 = vector.load %arg2[%c5, %c0_49, %c0_50] : memref<27x16x128xf32, #tpu.memory_space<vmem>>, vector<1x16x128xf32>
    %89 = vector.shape_cast %88 : vector<1x16x128xf32> to vector<16x128xf32>
    %90 = arith.mulf %87, %89 : vector<16x128xf32>
    %91 = arith.addf %77, %90 : vector<16x128xf32>
    %c14 = arith.constant 14 : index
    %c0_51 = arith.constant 0 : index
    %c0_52 = arith.constant 0 : index
    %92 = vector.load %arg2[%c14, %c0_51, %c0_52] : memref<27x16x128xf32, #tpu.memory_space<vmem>>, vector<1x16x128xf32>
    %93 = vector.shape_cast %92 : vector<1x16x128xf32> to vector<16x128xf32>
    %94 = arith.mulf %87, %93 : vector<16x128xf32>
    %95 = arith.addf %81, %94 : vector<16x128xf32>
    %c23 = arith.constant 23 : index
    %c0_53 = arith.constant 0 : index
    %c0_54 = arith.constant 0 : index
    %96 = vector.load %arg2[%c23, %c0_53, %c0_54] : memref<27x16x128xf32, #tpu.memory_space<vmem>>, vector<1x16x128xf32>
    %97 = vector.shape_cast %96 : vector<1x16x128xf32> to vector<16x128xf32>
    %98 = arith.mulf %87, %97 : vector<16x128xf32>
    %99 = arith.addf %85, %98 : vector<16x128xf32>
    %cst_55 = arith.constant 2.000000e+00 : f32
    %100 = vector.broadcast %cst_55 : f32 to vector<16x128xf32>
    %101 = arith.mulf %100, %68 : vector<16x128xf32>
    %102 = arith.subf %101, %66 : vector<16x128xf32>
    %103 = arith.subf %102, %67 : vector<16x128xf32>
    %cst_56 = arith.constant 0.31539157 : f32
    %104 = vector.broadcast %cst_56 : f32 to vector<16x128xf32>
    %105 = arith.mulf %104, %103 : vector<16x128xf32>
    %c6 = arith.constant 6 : index
    %c0_57 = arith.constant 0 : index
    %c0_58 = arith.constant 0 : index
    %106 = vector.load %arg2[%c6, %c0_57, %c0_58] : memref<27x16x128xf32, #tpu.memory_space<vmem>>, vector<1x16x128xf32>
    %107 = vector.shape_cast %106 : vector<1x16x128xf32> to vector<16x128xf32>
    %108 = arith.mulf %105, %107 : vector<16x128xf32>
    %109 = arith.addf %91, %108 : vector<16x128xf32>
    %c15 = arith.constant 15 : index
    %c0_59 = arith.constant 0 : index
    %c0_60 = arith.constant 0 : index
    %110 = vector.load %arg2[%c15, %c0_59, %c0_60] : memref<27x16x128xf32, #tpu.memory_space<vmem>>, vector<1x16x128xf32>
    %111 = vector.shape_cast %110 : vector<1x16x128xf32> to vector<16x128xf32>
    %112 = arith.mulf %105, %111 : vector<16x128xf32>
    %113 = arith.addf %95, %112 : vector<16x128xf32>
    %c24 = arith.constant 24 : index
    %c0_61 = arith.constant 0 : index
    %c0_62 = arith.constant 0 : index
    %114 = vector.load %arg2[%c24, %c0_61, %c0_62] : memref<27x16x128xf32, #tpu.memory_space<vmem>>, vector<1x16x128xf32>
    %115 = vector.shape_cast %114 : vector<1x16x128xf32> to vector<16x128xf32>
    %116 = arith.mulf %105, %115 : vector<16x128xf32>
    %117 = arith.addf %99, %116 : vector<16x128xf32>
    %cst_63 = arith.constant -1.09254849 : f32
    %118 = vector.broadcast %cst_63 : f32 to vector<16x128xf32>
    %119 = arith.mulf %118, %71 : vector<16x128xf32>
    %c7 = arith.constant 7 : index
    %c0_64 = arith.constant 0 : index
    %c0_65 = arith.constant 0 : index
    %120 = vector.load %arg2[%c7, %c0_64, %c0_65] : memref<27x16x128xf32, #tpu.memory_space<vmem>>, vector<1x16x128xf32>
    %121 = vector.shape_cast %120 : vector<1x16x128xf32> to vector<16x128xf32>
    %122 = arith.mulf %119, %121 : vector<16x128xf32>
    %123 = arith.addf %109, %122 : vector<16x128xf32>
    %c16 = arith.constant 16 : index
    %c0_66 = arith.constant 0 : index
    %c0_67 = arith.constant 0 : index
    %124 = vector.load %arg2[%c16, %c0_66, %c0_67] : memref<27x16x128xf32, #tpu.memory_space<vmem>>, vector<1x16x128xf32>
    %125 = vector.shape_cast %124 : vector<1x16x128xf32> to vector<16x128xf32>
    %126 = arith.mulf %119, %125 : vector<16x128xf32>
    %127 = arith.addf %113, %126 : vector<16x128xf32>
    %c25 = arith.constant 25 : index
    %c0_68 = arith.constant 0 : index
    %c0_69 = arith.constant 0 : index
    %128 = vector.load %arg2[%c25, %c0_68, %c0_69] : memref<27x16x128xf32, #tpu.memory_space<vmem>>, vector<1x16x128xf32>
    %129 = vector.shape_cast %128 : vector<1x16x128xf32> to vector<16x128xf32>
    %130 = arith.mulf %119, %129 : vector<16x128xf32>
    %131 = arith.addf %117, %130 : vector<16x128xf32>
    %132 = arith.subf %66, %67 : vector<16x128xf32>
    %cst_70 = arith.constant 0.546274245 : f32
    %133 = vector.broadcast %cst_70 : f32 to vector<16x128xf32>
    %134 = arith.mulf %133, %132 : vector<16x128xf32>
    %c8 = arith.constant 8 : index
    %c0_71 = arith.constant 0 : index
    %c0_72 = arith.constant 0 : index
    %135 = vector.load %arg2[%c8, %c0_71, %c0_72] : memref<27x16x128xf32, #tpu.memory_space<vmem>>, vector<1x16x128xf32>
    %136 = vector.shape_cast %135 : vector<1x16x128xf32> to vector<16x128xf32>
    %137 = arith.mulf %134, %136 : vector<16x128xf32>
    %138 = arith.addf %123, %137 : vector<16x128xf32>
    %c17 = arith.constant 17 : index
    %c0_73 = arith.constant 0 : index
    %c0_74 = arith.constant 0 : index
    %139 = vector.load %arg2[%c17, %c0_73, %c0_74] : memref<27x16x128xf32, #tpu.memory_space<vmem>>, vector<1x16x128xf32>
    %140 = vector.shape_cast %139 : vector<1x16x128xf32> to vector<16x128xf32>
    %141 = arith.mulf %134, %140 : vector<16x128xf32>
    %142 = arith.addf %127, %141 : vector<16x128xf32>
    %c26 = arith.constant 26 : index
    %c0_75 = arith.constant 0 : index
    %c0_76 = arith.constant 0 : index
    %143 = vector.load %arg2[%c26, %c0_75, %c0_76] : memref<27x16x128xf32, #tpu.memory_space<vmem>>, vector<1x16x128xf32>
    %144 = vector.shape_cast %143 : vector<1x16x128xf32> to vector<16x128xf32>
    %145 = arith.mulf %134, %144 : vector<16x128xf32>
    %146 = arith.addf %131, %145 : vector<16x128xf32>
    %cst_77 = arith.constant 0.000000e+00 : f32
    %147 = vector.broadcast %cst_77 : f32 to vector<16x128xf32>
    %148 = arith.maximumf %138, %147 : vector<16x128xf32>
    %c0_78 = arith.constant 0 : index
    %c0_79 = arith.constant 0 : index
    %c0_80 = arith.constant 0 : index
    %149 = vector.load %arg3[%c0_78, %c0_79, %c0_80] : memref<3x16x128xf32, #tpu.memory_space<vmem>>, vector<1x16x128xf32>
    %150 = vector.shape_cast %149 : vector<1x16x128xf32> to vector<16x128xf32>
    %151 = vector.shape_cast %148 : vector<16x128xf32> to vector<1x16x128xf32>
    tpu.vector_store %arg3[%c0_78, %c0_79, %c0_80], %151 {strides = array<i32>} : memref<3x16x128xf32, #tpu.memory_space<vmem>>, vector<1x16x128xf32>,
    %cst_81 = arith.constant 0.000000e+00 : f32
    %152 = vector.broadcast %cst_81 : f32 to vector<16x128xf32>
    %153 = arith.maximumf %142, %152 : vector<16x128xf32>
    %c1_82 = arith.constant 1 : index
    %c0_83 = arith.constant 0 : index
    %c0_84 = arith.constant 0 : index
    %154 = vector.load %arg3[%c1_82, %c0_83, %c0_84] : memref<3x16x128xf32, #tpu.memory_space<vmem>>, vector<1x16x128xf32>
    %155 = vector.shape_cast %154 : vector<1x16x128xf32> to vector<16x128xf32>
    %156 = vector.shape_cast %153 : vector<16x128xf32> to vector<1x16x128xf32>
    tpu.vector_store %arg3[%c1_82, %c0_83, %c0_84], %156 {strides = array<i32>} : memref<3x16x128xf32, #tpu.memory_space<vmem>>, vector<1x16x128xf32>,
    %cst_85 = arith.constant 0.000000e+00 : f32
    %157 = vector.broadcast %cst_85 : f32 to vector<16x128xf32>
    %158 = arith.maximumf %146, %157 : vector<16x128xf32>
    %c2_86 = arith.constant 2 : index
    %c0_87 = arith.constant 0 : index
    %c0_88 = arith.constant 0 : index
    %159 = vector.load %arg3[%c2_86, %c0_87, %c0_88] : memref<3x16x128xf32, #tpu.memory_space<vmem>>, vector<1x16x128xf32>
    %160 = vector.shape_cast %159 : vector<1x16x128xf32> to vector<16x128xf32>
    %161 = vector.shape_cast %158 : vector<16x128xf32> to vector<1x16x128xf32>
    tpu.vector_store %arg3[%c2_86, %c0_87, %c0_88], %161 {strides = array<i32>} : memref<3x16x128xf32, #tpu.memory_space<vmem>>, vector<1x16x128xf32>,
    return
  }
  func.func @transform_0(%arg0: i32) -> (i32, i32, i32) {
    %c0_i32 = arith.constant 0 : i32
    %c0_i32_0 = arith.constant 0 : i32
    %c0_i32_1 = arith.constant 0 : i32
    return %c0_i32, %arg0, %c0_i32_0 : i32, i32, i32
  }
  func.func @transform_1(%arg0: i32) -> (i32, i32, i32) {
    %c0_i32 = arith.constant 0 : i32
    %c0_i32_0 = arith.constant 0 : i32
    %c0_i32_1 = arith.constant 0 : i32
    return %c0_i32, %arg0, %c0_i32_0 : i32, i32, i32
  }
  func.func @transform_2(%arg0: i32) -> (i32, i32, i32) {
    %c0_i32 = arith.constant 0 : i32
    %c0_i32_0 = arith.constant 0 : i32
    %c0_i32_1 = arith.constant 0 : i32
    return %c0_i32, %arg0, %c0_i32_0 : i32, i32, i32
  }
}

</mosaic_0001>

<llo_original>
// kernel: tpu_custom_call.1
$region0: #{tpu_custom_call.1}
  #allocation0 [shape = 'u32[]', space=smem, size = 0x4, offset = 0x4, fixed_abs, tag = 'smem constant byte address 0x4 - core index']
  #allocation1 [shape = 'u32[144,128]{1,0:T(1,128)}', space=vmem, size = 0x12000, scoped, tag = 'internal scratch']
  %s0 = inlined_call_operand.hbm [shape: f32[3,16,128], index: 0, kind: input, shape index: {}]
  %s1 = inlined_call_operand.hbm [shape: f32[27,16,128], index: 1, kind: input, shape index: {}]
  %s2 = inlined_call_operand.hbm [shape: f32[3,16,128], index: 2, kind: output, shape index: {}]
  %s3 = sld [smem:[#allocation0]]
  $region26: #{tpu_custom_call.1} parent=0
    _
  %s5 = ssub.s32 1, %s3
  %s6 = scalar_select 0, %s5, %s3
  $region1: #{tpu_custom_call.1} parent=0
    #allocation2 [shape = 'u8[24576]{0}', space=vmem, size = 0x6000, scoped, tag = 'input window, operand 0, single buffered']
    #allocation3 [shape = 's32[1]{0}', space=sflag, size = 0x4, scoped, tag = 'scoped memory for tpu_custom_call.1']
    #allocation4 [shape = 's32[1]{0}', space=sflag, size = 0x4, scoped, tag = 'scoped memory for tpu_custom_call.1']
    #allocation5 [shape = 'u8[221184]{0}', space=vmem, size = 0x36000, scoped, tag = 'input window, operand 1, single buffered']
    #allocation6 [shape = 's32[1]{0}', space=sflag, size = 0x4, scoped, tag = 'scoped memory for tpu_custom_call.1']
    #allocation7 [shape = 'u8[24576]{0}', space=vmem, size = 0x6000, scoped, tag = 'output window, operand 0, single buffered']
    %7 = vsyncpa [#allocation3], 0
    %8 = vsyncpa [#allocation6], 0
    %9 = vsyncpa [#allocation4], 0
    // Predicated region
    $region2: #{tpu_custom_call.1} parent=1 // pred_check
      _
    $region3: #{tpu_custom_call.1} parent=1 // pred_check_branch
      %11 = sbr.rel (0) target = $region5
    $region4: #{tpu_custom_call.1} parent=1 // pred_region
      %s13 = ssub.s32 768, 768
      %14 = vsyncadd [#allocation3], %s13
      %s15 = sshll.u32 [#allocation2], 4
      %s16 = int_to_ptr.vmem [resolvable:$true] %s15
      %21 = dma.hbm_to_vmem [thread:$0]  %s0, 768, %s16, [#allocation3], 128, 128, 8
    $region5: #{tpu_custom_call.1} parent=1 // pred_fallthru
      _
    // Predicated region
    $region6: #{tpu_custom_call.1} parent=1 // pred_check
      _
    $region7: #{tpu_custom_call.1} parent=1 // pred_check_branch
      %23 = sbr.rel (0) target = $region9
    $region8: #{tpu_custom_call.1} parent=1 // pred_region
      %s25 = ssub.s32 6912, 6912
      %26 = vsyncadd [#allocation6], %s25
      %s27 = sshll.u32 [#allocation5], 4
      %s28 = int_to_ptr.vmem [resolvable:$true] %s27
      %33 = dma.hbm_to_vmem [thread:$0]  %s1, 6912, %s28, [#allocation6], 128, 128, 8
    $region9: #{tpu_custom_call.1} parent=1 // pred_fallthru
      _
    // Predicated region
    $region10: #{tpu_custom_call.1} parent=1 // pred_check
      _
    $region11: #{tpu_custom_call.1} parent=1 // pred_check_branch
      %35 = sbr.rel (0) target = $region13
    $region12: #{tpu_custom_call.1} parent=1 // pred_region
      %36 = dma.done [#allocation3], 768
    $region13: #{tpu_custom_call.1} parent=1 // pred_fallthru
      _
    // Predicated region
    $region14: #{tpu_custom_call.1} parent=1 // pred_check
      _
    $region15: #{tpu_custom_call.1} parent=1 // pred_check_branch
      %38 = sbr.rel (0) target = $region17
    $region16: #{tpu_custom_call.1} parent=1 // pred_region
      %39 = dma.done [#allocation6], 6912
    $region17: #{tpu_custom_call.1} parent=1 // pred_fallthru
      _
    %v40 = vld [vmem:[#allocation5] sm:$0xff]
    %v41 = vld [vmem:[#allocation5 + $0x8] sm:$0xff]
    %v42 = vmul.f32 %v40, 0.2820948
    %v43 = vmul.f32 %v41, 0.2820948
    %v44 = vadd.f32 %v42, 0.5
    %v45 = vadd.f32 %v43, 0.5
    %s46 = scalar_lea.vmem [#allocation5], 144
    %v47 = vld [vmem:[%s46] sm:$0xff]
    %v48 = vld [vmem:[%s46 + $0x8] sm:$0xff]
    %v49 = vmul.f32 %v47, 0.2820948
    %v50 = vmul.f32 %v48, 0.2820948
    %v51 = vadd.f32 %v49, 0.5
    %v52 = vadd.f32 %v50, 0.5
    %s53 = scalar_lea.vmem [#allocation5], 288
    %v54 = vld [vmem:[%s53] sm:$0xff]
    %v55 = vld [vmem:[%s53 + $0x8] sm:$0xff]
    %v56 = vmul.f32 %v54, 0.2820948
    %v57 = vmul.f32 %v55, 0.2820948
    %v58 = vadd.f32 %v56, 0.5
    %v59 = vadd.f32 %v57, 0.5
    %v60 = vld [vmem:[#allocation2] sm:$0xff]
    %v61 = vld [vmem:[#allocation2 + $0x8] sm:$0xff]
    %s62 = scalar_lea.vmem [#allocation2], 16
    %v63 = vld [vmem:[%s62] sm:$0xff]
    %v64 = vld [vmem:[%s62 + $0x8] sm:$0xff]
    %s65 = scalar_lea.vmem [#allocation2], 32
    %v66 = vld [vmem:[%s65] sm:$0xff]
    %v67 = vld [vmem:[%s65 + $0x8] sm:$0xff]
    %v68 = vmul.f32 %v63, -0.48860252
    %v69 = vmul.f32 %v64, -0.48860252
    %s70 = scalar_lea.vmem [#allocation5], 16
    %v71 = vld [vmem:[%s70] sm:$0xff]
    %v72 = vld [vmem:[%s70 + $0x8] sm:$0xff]
    %v73 = vmul.f32 %v68, %v71
    %v74 = vmul.f32 %v69, %v72
    %v75 = vadd.f32 %v44, %v73
    %v76 = vadd.f32 %v45, %v74
    %s77 = scalar_lea.vmem [#allocation5], 160
    %v78 = vld [vmem:[%s77] sm:$0xff]
    %v79 = vld [vmem:[%s77 + $0x8] sm:$0xff]
    %v80 = vmul.f32 %v68, %v78
    %v81 = vmul.f32 %v69, %v79
    %v82 = vadd.f32 %v51, %v80
    %v83 = vadd.f32 %v52, %v81
    %s84 = scalar_lea.vmem [#allocation5], 304
    %v85 = vld [vmem:[%s84] sm:$0xff]
    %v86 = vld [vmem:[%s84 + $0x8] sm:$0xff]
    %v87 = vmul.f32 %v68, %v85
    %v88 = vmul.f32 %v69, %v86
    %v89 = vadd.f32 %v58, %v87
    %v90 = vadd.f32 %v59, %v88
    %v91 = vmul.f32 %v66, 0.48860252
    %v92 = vmul.f32 %v67, 0.48860252
    %s93 = scalar_lea.vmem [#allocation5], 32
    %v94 = vld [vmem:[%s93] sm:$0xff]
    %v95 = vld [vmem:[%s93 + $0x8] sm:$0xff]
    %v96 = vmul.f32 %v91, %v94
    %v97 = vmul.f32 %v92, %v95
    %v98 = vadd.f32 %v75, %v96
    %v99 = vadd.f32 %v76, %v97
    %s100 = scalar_lea.vmem [#allocation5], 176
    %v101 = vld [vmem:[%s100] sm:$0xff]
    %v102 = vld [vmem:[%s100 + $0x8] sm:$0xff]
    %v103 = vmul.f32 %v91, %v101
    %v104 = vmul.f32 %v92, %v102
    %v105 = vadd.f32 %v82, %v103
    %v106 = vadd.f32 %v83, %v104
    %s107 = scalar_lea.vmem [#allocation5], 320
    %v108 = vld [vmem:[%s107] sm:$0xff]
    %v109 = vld [vmem:[%s107 + $0x8] sm:$0xff]
    %v110 = vmul.f32 %v91, %v108
    %v111 = vmul.f32 %v92, %v109
    %v112 = vadd.f32 %v89, %v110
    %v113 = vadd.f32 %v90, %v111
    %v114 = vmul.f32 %v60, -0.48860252
    %v115 = vmul.f32 %v61, -0.48860252
    %s116 = scalar_lea.vmem [#allocation5], 48
    %v117 = vld [vmem:[%s116] sm:$0xff]
    %v118 = vld [vmem:[%s116 + $0x8] sm:$0xff]
    %v119 = vmul.f32 %v114, %v117
    %v120 = vmul.f32 %v115, %v118
    %v121 = vadd.f32 %v98, %v119
    %v122 = vadd.f32 %v99, %v120
    %s123 = scalar_lea.vmem [#allocation5], 192
    %v124 = vld [vmem:[%s123] sm:$0xff]
    %v125 = vld [vmem:[%s123 + $0x8] sm:$0xff]
    %v126 = vmul.f32 %v114, %v124
    %v127 = vmul.f32 %v115, %v125
    %v128 = vadd.f32 %v105, %v126
    %v129 = vadd.f32 %v106, %v127
    %s130 = scalar_lea.vmem [#allocation5], 336
    %v131 = vld [vmem:[%s130] sm:$0xff]
    %v132 = vld [vmem:[%s130 + $0x8] sm:$0xff]
    %v133 = vmul.f32 %v114, %v131
    %v134 = vmul.f32 %v115, %v132
    %v135 = vadd.f32 %v112, %v133
    %v136 = vadd.f32 %v113, %v134
    %v137 = vmul.f32 %v60, %v60
    %v138 = vmul.f32 %v61, %v61
    %v139 = vmul.f32 %v63, %v63
    %v140 = vmul.f32 %v64, %v64
    %v141 = vmul.f32 %v66, %v66
    %v142 = vmul.f32 %v67, %v67
    %v143 = vmul.f32 %v60, %v63
    %v144 = vmul.f32 %v61, %v64
    %v145 = vmul.f32 %v63, %v66
    %v146 = vmul.f32 %v64, %v67
    %v147 = vmul.f32 %v60, %v66
    %v148 = vmul.f32 %v61, %v67
    %v149 = vmul.f32 %v143, 1.0925485
    %v150 = vmul.f32 %v144, 1.0925485
    %s151 = scalar_lea.vmem [#allocation5], 64
    %v152 = vld [vmem:[%s151] sm:$0xff]
    %v153 = vld [vmem:[%s151 + $0x8] sm:$0xff]
    %v154 = vmul.f32 %v149, %v152
    %v155 = vmul.f32 %v150, %v153
    %v156 = vadd.f32 %v121, %v154
    %v157 = vadd.f32 %v122, %v155
    %s158 = scalar_lea.vmem [#allocation5], 208
    %v159 = vld [vmem:[%s158] sm:$0xff]
    %v160 = vld [vmem:[%s158 + $0x8] sm:$0xff]
    %v161 = vmul.f32 %v149, %v159
    %v162 = vmul.f32 %v150, %v160
    %v163 = vadd.f32 %v128, %v161
    %v164 = vadd.f32 %v129, %v162
    %s165 = scalar_lea.vmem [#allocation5], 352
    %v166 = vld [vmem:[%s165] sm:$0xff]
    %v167 = vld [vmem:[%s165 + $0x8] sm:$0xff]
    %v168 = vmul.f32 %v149, %v166
    %v169 = vmul.f32 %v150, %v167
    %v170 = vadd.f32 %v135, %v168
    %v171 = vadd.f32 %v136, %v169
    %v172 = vmul.f32 %v145, -1.0925485
    %v173 = vmul.f32 %v146, -1.0925485
    %s174 = scalar_lea.vmem [#allocation5], 80
    %v175 = vld [vmem:[%s174] sm:$0xff]
    %v176 = vld [vmem:[%s174 + $0x8] sm:$0xff]
    %v177 = vmul.f32 %v172, %v175
    %v178 = vmul.f32 %v173, %v176
    %v179 = vadd.f32 %v156, %v177
    %v180 = vadd.f32 %v157, %v178
    %s181 = scalar_lea.vmem [#allocation5], 224
    %v182 = vld [vmem:[%s181] sm:$0xff]
    %v183 = vld [vmem:[%s181 + $0x8] sm:$0xff]
    %v184 = vmul.f32 %v172, %v182
    %v185 = vmul.f32 %v173, %v183
    %v186 = vadd.f32 %v163, %v184
    %v187 = vadd.f32 %v164, %v185
    %s188 = scalar_lea.vmem [#allocation5], 368
    %v189 = vld [vmem:[%s188] sm:$0xff]
    %v190 = vld [vmem:[%s188 + $0x8] sm:$0xff]
    %v191 = vmul.f32 %v172, %v189
    %v192 = vmul.f32 %v173, %v190
    %v193 = vadd.f32 %v170, %v191
    %v194 = vadd.f32 %v171, %v192
    %v195 = vmul.f32 %v141, 2.0
    %v196 = vmul.f32 %v142, 2.0
    %v197 = vsub.f32 %v195, %v137
    %v198 = vsub.f32 %v196, %v138
    %v199 = vsub.f32 %v197, %v139
    %v200 = vsub.f32 %v198, %v140
    %v201 = vmul.f32 %v199, 0.31539157
    %v202 = vmul.f32 %v200, 0.31539157
    %s203 = scalar_lea.vmem [#allocation5], 96
    %v204 = vld [vmem:[%s203] sm:$0xff]
    %v205 = vld [vmem:[%s203 + $0x8] sm:$0xff]
    %v206 = vmul.f32 %v201, %v204
    %v207 = vmul.f32 %v202, %v205
    %v208 = vadd.f32 %v179, %v206
    %v209 = vadd.f32 %v180, %v207
    %s210 = scalar_lea.vmem [#allocation5], 240
    %v211 = vld [vmem:[%s210] sm:$0xff]
    %v212 = vld [vmem:[%s210 + $0x8] sm:$0xff]
    %v213 = vmul.f32 %v201, %v211
    %v214 = vmul.f32 %v202, %v212
    %v215 = vadd.f32 %v186, %v213
    %v216 = vadd.f32 %v187, %v214
    %s217 = scalar_lea.vmem [#allocation5], 384
    %v218 = vld [vmem:[%s217] sm:$0xff]
    %v219 = vld [vmem:[%s217 + $0x8] sm:$0xff]
    %v220 = vmul.f32 %v201, %v218
    %v221 = vmul.f32 %v202, %v219
    %v222 = vadd.f32 %v193, %v220
    %v223 = vadd.f32 %v194, %v221
    %v224 = vmul.f32 %v147, -1.0925485
    %v225 = vmul.f32 %v148, -1.0925485
    %s226 = scalar_lea.vmem [#allocation5], 112
    %v227 = vld [vmem:[%s226] sm:$0xff]
    %v228 = vld [vmem:[%s226 + $0x8] sm:$0xff]
    %v229 = vmul.f32 %v224, %v227
    %v230 = vmul.f32 %v225, %v228
    %v231 = vadd.f32 %v208, %v229
    %v232 = vadd.f32 %v209, %v230
    %s233 = scalar_lea.vmem [#allocation5], 256
    %v234 = vld [vmem:[%s233] sm:$0xff]
    %v235 = vld [vmem:[%s233 + $0x8] sm:$0xff]
    %v236 = vmul.f32 %v224, %v234
    %v237 = vmul.f32 %v225, %v235
    %v238 = vadd.f32 %v215, %v236
    %v239 = vadd.f32 %v216, %v237
    %s240 = scalar_lea.vmem [#allocation5], 400
    %v241 = vld [vmem:[%s240] sm:$0xff]
    %v242 = vld [vmem:[%s240 + $0x8] sm:$0xff]
    %v243 = vmul.f32 %v224, %v241
    %v244 = vmul.f32 %v225, %v242
    %v245 = vadd.f32 %v222, %v243
    %v246 = vadd.f32 %v223, %v244
    %v247 = vsub.f32 %v137, %v139
    %v248 = vsub.f32 %v138, %v140
    %v249 = vmul.f32 %v247, 0.54627424
    %v250 = vmul.f32 %v248, 0.54627424
    %s251 = scalar_lea.vmem [#allocation5], 128
    %v252 = vld [vmem:[%s251] sm:$0xff]
    %v253 = vld [vmem:[%s251 + $0x8] sm:$0xff]
    %v254 = vmul.f32 %v249, %v252
    %v255 = vmul.f32 %v250, %v253
    %v256 = vadd.f32 %v231, %v254
    %v257 = vadd.f32 %v232, %v255
    %s258 = scalar_lea.vmem [#allocation5], 272
    %v259 = vld [vmem:[%s258] sm:$0xff]
    %v260 = vld [vmem:[%s258 + $0x8] sm:$0xff]
    %v261 = vmul.f32 %v249, %v259
    %v262 = vmul.f32 %v250, %v260
    %v263 = vadd.f32 %v238, %v261
    %v264 = vadd.f32 %v239, %v262
    %s265 = scalar_lea.vmem [#allocation5], 416
    %v266 = vld [vmem:[%s265] sm:$0xff]
    %v267 = vld [vmem:[%s265 + $0x8] sm:$0xff]
    %v268 = vmul.f32 %v249, %v266
    %v269 = vmul.f32 %v250, %v267
    %v270 = vadd.f32 %v245, %v268
    %v271 = vadd.f32 %v246, %v269
    %v272 = vmax.f32 %v256, 0.0
    %v273 = vmax.f32 %v257, 0.0
    %274 = vst [vmem:[#allocation7] sm:$0xff] %v272
    %275 = vst [vmem:[#allocation7 + $0x8] sm:$0xff] %v273
    %v276 = vmax.f32 %v263, 0.0
    %v277 = vmax.f32 %v264, 0.0
    %s278 = scalar_lea.vmem [#allocation7], 16
    %279 = vst [vmem:[%s278] sm:$0xff] %v276
    %280 = vst [vmem:[%s278 + $0x8] sm:$0xff] %v277
    %v281 = vmax.f32 %v270, 0.0
    %v282 = vmax.f32 %v271, 0.0
    %s283 = scalar_lea.vmem [#allocation7], 32
    %284 = vst [vmem:[%s283] sm:$0xff] %v281
    %285 = vst [vmem:[%s283 + $0x8] sm:$0xff] %v282
    // Predicated region
    $region18: #{tpu_custom_call.1} parent=1 // pred_check
      _
    $region19: #{tpu_custom_call.1} parent=1 // pred_check_branch
      %287 = sbr.rel (0) target = $region21
    $region20: #{tpu_custom_call.1} parent=1 // pred_region
      %s289 = ssub.s32 768, 768
      %290 = vsyncadd [#allocation4], %s289
      %s291 = sshll.u32 [#allocation7], 4
      %s292 = int_to_ptr.vmem [resolvable:$true] %s291
      %297 = dma.vmem_to_hbm [thread:$0]  %s292, 768, %s2, [#allocation4], 128, 128, 8
    $region21: #{tpu_custom_call.1} parent=1 // pred_fallthru
      _
    // Predicated region
    $region22: #{tpu_custom_call.1} parent=1 // pred_check
      _
    $region23: #{tpu_custom_call.1} parent=1 // pred_check_branch
      %299 = sbr.rel (0) target = $region25
    $region24: #{tpu_custom_call.1} parent=1 // pred_region
      %300 = dma.done [#allocation4], 768
    $region25: #{tpu_custom_call.1} parent=1 // pred_fallthru
      _
    %301 = vsyncpa [#allocation3], 1
    %302 = vsyncpa [#allocation6], 1
    %303 = vsyncpa [#allocation4], 1

</llo_original>
